<compile_context>
chip_gen: v7x
topology: tpu7x:2x2x1
jax: 0.10.0
libtpu: 0.0.40
codegen_flags: <defaults>
</compile_context>

<pallas_src>
import functools

import jax
import jax.numpy as jnp
from jax.experimental import pallas as pl
from jax.experimental.pallas import tpu as pltpu


def fourier_unit_kernel(w_ref, x_ref, bias_ref, out_ref):
    # One channel-mix matmul on the MXU (block-diagonal weight folds the batch
    # into the sublane/M dimension), then the precomputed eps bias and |.|.
    z = jnp.dot(w_ref[...], x_ref[...], preferred_element_type=jnp.float32)
    out_ref[...] = jnp.abs(z + bias_ref[...]).astype(out_ref.dtype)


def _eps_bias_field(H, W):
    """Data-independent bias produced by the eps insertions in forward().

    spectrum += (2e-8 + 1e-8j) on every rfft2 bin, plus the +1e-8 added to the
    spatial signal before rfft2.  irfft2 is linear, so this is a fixed field.
    Computed with the same jnp.fft.irfft2 the reference uses, so the treatment
    of the (non-Hermitian) imaginary eps on the DC/Nyquist columns matches.
    """
    Wf = W // 2 + 1
    const_spec = jnp.full((H, Wf), 2e-8 + 1e-8j, dtype=jnp.complex64)
    field = jnp.fft.irfft2(const_spec, s=(H, W), norm='backward')
    return field.astype(jnp.float32) + jnp.float32(1e-8)


@functools.partial(jax.jit, static_argnames=("hw_splits",))
def fourier_unit(x, w_pre0, *, hw_splits=1):
    """x: (B, C_in, H, W) float32; w_pre0: (C_out, C_in, 1, 1) float32.

    hw_splits=1 -> single grid step (best on single-TC v5e/v6e).
    hw_splits=2 -> two "parallel" lane-halves of H*W (feeds both v7x TCs).
    """
    B, C_in, H, W = x.shape
    C_out = w_pre0.shape[0]
    HW = H * W

    # Block-diagonal weight kron(I_B, W): one matmul covers the whole batch.
    # TODO(synk): for large B (or large B*C) switch back to a grid over batch
    # instead of the O((B*C)^2) block-diagonal weight.
    w2d = w_pre0.reshape(C_out, C_in).astype(jnp.float32)
    w_block = jnp.kron(jnp.eye(B, dtype=jnp.float32), w2d)      # (B*C_out, B*C_in)

    x_stack = x.reshape(B * C_in, HW).astype(jnp.float32)        # zero-copy reshape
    bias = _eps_bias_field(H, W).reshape(1, HW)                  # constant-folded

    if HW % (128 * hw_splits) != 0:
        hw_splits = 1                                            # keep blocks lane-dense
    hw_tile = HW // hw_splits

    BCo = B * C_out
    BCi = B * C_in

    out_stack = pl.pallas_call(
        fourier_unit_kernel,
        out_shape=jax.ShapeDtypeStruct((BCo, HW), jnp.float32),
        grid_spec=pltpu.PrefetchScalarGridSpec(
            num_scalar_prefetch=0,
            grid=(hw_splits,),
            in_specs=[
                pl.BlockSpec((BCo, BCi), lambda j: (0, 0)),      # block-diag conv weight
                pl.BlockSpec((BCi, hw_tile), lambda j: (0, j)),  # stacked input
                pl.BlockSpec((1, hw_tile), lambda j: (0, j)),    # eps bias field
            ],
            out_specs=pl.BlockSpec((BCo, hw_tile), lambda j: (0, j)),
        ),
        compiler_params=pltpu.CompilerParams(
            dimension_semantics=("parallel",)),
        # VMEM use is ~20 KiB total here; no explicit vmem_limit_bytes needed.
    )(w_block, x_stack, bias)

    return out_stack.reshape(B, C_out, H, W)


if __name__ == "__main__":
    key = jax.random.PRNGKey(0)
    kx, kw = jax.random.split(key)

    B, C, H, W = 2, 4, 16, 16     # in_channels = out_channels = 4
    x = jax.random.normal(kx, (B, C, H, W), dtype=jnp.float32)

    # pre0 = Conv2d(C -> C, k=1, bias=False): weight shape (C, C, 1, 1),
    # deterministic Kaiming-uniform-style init (bound = 1/sqrt(fan_in)).
    bound = 1.0 / (C ** 0.5)
    w_pre0 = jax.random.uniform(kw, (C, C, 1, 1), jnp.float32, -bound, bound)

    out = fourier_unit(x, w_pre0)
    jax.block_until_ready(out)
    assert out.shape == (B, C, H, W)

    # Pure-JAX reference mirroring the PyTorch forward() (exact elementwise
    # channel mix to avoid matmul-precision ambiguity in the reference itself).
    w = w_pre0.reshape(C, C)
    y = jnp.sum(w[None, :, :, None, None] * x[:, None, :, :, :], axis=2) + 1e-8
    xf = jnp.fft.rfft2(y, norm='backward')
    real = jnp.abs(xf) * jnp.cos(jnp.angle(xf)) + 1e-8
    imag = jnp.abs(xf) * jnp.sin(jnp.angle(xf)) + 1e-8
    ref = jnp.abs(jnp.fft.irfft2(real + 1e-8 + 1j * imag, s=(H, W), norm='backward'))
    err = float(jnp.max(jnp.abs(out - ref)))
    assert jnp.allclose(out, ref, rtol=1e-2, atol=1e-3), err

    print("KERNEL_OK")
</pallas_src>

<mosaic_0001>
module attributes {stable_mosaic.version = 11 : i64} {
  func.func @fourier_unit_kernel(%arg0: i32, %arg1: memref<8x8xf32, #tpu.memory_space<vmem>>, %arg2: memref<8x256xf32, #tpu.memory_space<vmem>>, %arg3: memref<1x256xf32, #tpu.memory_space<vmem>>, %arg4: memref<8x256xf32, #tpu.memory_space<vmem>>) attributes {dimension_semantics = [#tpu.dimension_semantics<parallel>], iteration_bounds = array<i64: 1>, scalar_prefetch = 0 : i64, scratch_operands = 0 : i64, tpu.core_type = #tpu.core_type<tc>, window_params = [{pipeline_mode = #tpu.pipeline_mode<synchronous>, transform_indices = @transform_0, window_bounds = array<i64: 8, 8>}, {transform_indices = @transform_1, window_bounds = array<i64: 8, 256>}, {transform_indices = @transform_2, window_bounds = array<i64: 1, 256>}, {transform_indices = @transform_3, window_bounds = array<i64: 8, 256>}]} {
    %c0 = arith.constant 0 : index
    %c0_0 = arith.constant 0 : index
    %0 = vector.load %arg1[%c0, %c0_0] : memref<8x8xf32, #tpu.memory_space<vmem>>, vector<8x8xf32>
    %c0_1 = arith.constant 0 : index
    %c0_2 = arith.constant 0 : index
    %1 = vector.load %arg2[%c0_1, %c0_2] : memref<8x256xf32, #tpu.memory_space<vmem>>, vector<8x256xf32>
    %cst = arith.constant dense<0.000000e+00> : vector<8x256xf32>
    %2 = tpu.matmul %0, %1, %cst {dimension_numbers = #tpu.dot_dimension_numbers<[1], [0], [0], [1], [0, 0, 1, 1], [], []>} : vector<8x8xf32>, vector<8x256xf32>, vector<8x256xf32> -> vector<8x256xf32>
    %c0_3 = arith.constant 0 : index
    %c0_4 = arith.constant 0 : index
    %3 = vector.load %arg3[%c0_3, %c0_4] : memref<1x256xf32, #tpu.memory_space<vmem>>, vector<1x256xf32>
    %4 = vector.broadcast %3 : vector<1x256xf32> to vector<8x256xf32>
    %5 = arith.addf %2, %4 : vector<8x256xf32>
    %6 = math.absf %5 : vector<8x256xf32>
    %c0_5 = arith.constant 0 : index
    %c0_6 = arith.constant 0 : index
    %7 = vector.load %arg4[%c0_5, %c0_6] : memref<8x256xf32, #tpu.memory_space<vmem>>, vector<8x256xf32>
    tpu.vector_store %arg4[%c0_5, %c0_6], %6 {strides = array<i32>} : memref<8x256xf32, #tpu.memory_space<vmem>>, vector<8x256xf32>,
    return
  }
  func.func @transform_0(%arg0: i32) -> (i32, i32) {
    %c0_i32 = arith.constant 0 : i32
    %c0_i32_0 = arith.constant 0 : i32
    %c0_i32_1 = arith.constant 0 : i32
    return %c0_i32, %c0_i32_0 : i32, i32
  }
  func.func @transform_1(%arg0: i32) -> (i32, i32) {
    %c0_i32 = arith.constant 0 : i32
    %c0_i32_0 = arith.constant 0 : i32
    return %c0_i32, %arg0 : i32, i32
  }
  func.func @transform_2(%arg0: i32) -> (i32, i32) {
    %c0_i32 = arith.constant 0 : i32
    %c0_i32_0 = arith.constant 0 : i32
    return %c0_i32, %arg0 : i32, i32
  }
  func.func @transform_3(%arg0: i32) -> (i32, i32) {
    %c0_i32 = arith.constant 0 : i32
    %c0_i32_0 = arith.constant 0 : i32
    return %c0_i32, %arg0 : i32, i32
  }
}

</mosaic_0001>

<llo_original>
// kernel: reverse.1
$region0: #{reverse.1}
  %s0 = inlined_call_operand.vmem [shape: f32[16,7], index: 0, kind: input, shape index: {}]
  %s1 = inlined_call_operand.vmem [shape: f32[16,7], index: 1, kind: output, shape index: {}]
  $region1: #{reverse.1} parent=0
    #allocation0 [shape = 'u8[8192]{0}', space=vmem, size = 0x2000, scoped, tag = 'operand span for operand 0']
    #allocation1 [shape = 'u8[4096]{0}', space=vmem, size = 0x1000, scoped, tag = 'operand span for operand 1']
    %s2 = scalar_lea.vmem [#allocation0], 8
    // Predicated region
    $region2: #{reverse.1} parent=1 // pred_check
      _
    $region3: #{reverse.1} parent=1 // pred_check_branch
      %4 = sbr.rel (0) target = $region5
    $region4: #{reverse.1} parent=1 // pred_region
      // Predicated region
      $region6: #{reverse.1} parent=4 // pred_check
        _
      $region7: #{reverse.1} parent=4 // pred_check_branch
        %6 = sbr.rel (0) target = $region9
      $region8: #{reverse.1} parent=4 // pred_region
        // Predicated region
        $region21: #{reverse.1} parent=8 // pred_check
          _
        $region22: #{reverse.1} parent=8 // pred_check_branch
          %21 = sbr.rel (0) target = $region24
        $region23: #{reverse.1} parent=8 // pred_region
          loop: start=0, step=1, limit=1
          $region25: #{reverse.1} parent=23 // loop_pre_header
            _
          $region26: #{reverse.1} parent=23 // loop_header
            %s23 = sphi 0, %s27
            %p24 = scmp.ge.s32.totalorder %s23, 1
            %s28 = sphi %s0, %s0
            %s29 = sphi %s2, %s2
          $region27: #{reverse.1} parent=23 // loop_header_branch
            %26 = sbr.rel (%p24) target = $region31
          $region28: #{reverse.1} parent=23 // loop_body
            %v30 = vld [vmem:[%s28] sm:$0xff]
            %31 = vst [vmem:[%s29] sm:$0xff] %v30
          $region29: #{reverse.1} parent=23 // loop_footer
            %s27 = sadd.s32 1, %s23
          $region30: #{reverse.1} parent=23 // loop_footer_branch
            %22 = sbr.rel target = $region26
          $region31: #{reverse.1} parent=23 // loop_exit
            _
        $region24: #{reverse.1} parent=8 // pred_fallthru
          _
        // Predicated region
        $region32: #{reverse.1} parent=8 // pred_check
          _
        $region33: #{reverse.1} parent=8 // pred_check_branch
          %33 = sbr.rel target = $region35
        $region34: #{reverse.1} parent=8 // pred_region
          _
        $region35: #{reverse.1} parent=8 // pred_fallthru
          _
      $region9: #{reverse.1} parent=4 // pred_fallthru
        _
      // Predicated region
      $region10: #{reverse.1} parent=4 // pred_check
        _
      $region11: #{reverse.1} parent=4 // pred_check_branch
        %8 = sbr.rel target = $region13
      $region12: #{reverse.1} parent=4 // pred_region
        loop: start=0, step=1, limit=1
        $region14: #{reverse.1} parent=12 // loop_pre_header
          _
        $region15: #{reverse.1} parent=12 // loop_header
          %s11 = sphi 0, %s15
          %p12 = scmp.ge.s32.totalorder %s11, 1
          %s16 = sphi %s0, %s0
          %s17 = sphi %s2, %s2
        $region16: #{reverse.1} parent=12 // loop_header_branch
          %14 = sbr.rel (%p12) target = $region20
        $region17: #{reverse.1} parent=12 // loop_body
          %v18 = vld [vmem:[%s16] sm:$0xff]
          %19 = vst [vmem:[%s17] sm:$0xff] %v18
        $region18: #{reverse.1} parent=12 // loop_footer
          %s15 = sadd.s32 1, %s11
        $region19: #{reverse.1} parent=12 // loop_footer_branch
          %10 = sbr.rel target = $region15
        $region20: #{reverse.1} parent=12 // loop_exit
          _
      $region13: #{reverse.1} parent=4 // pred_fallthru
        _
    $region5: #{reverse.1} parent=1 // pred_fallthru
      _
    %34 = vnop
    %s35 = scalar_lea.vmem [#allocation0], 7
    %v36 = vld [vmem:[%s35] ss:$-1 sm:$0xff]
    %v37 = vrot.slane %v36, 1
    %38 = vst [vmem:[#allocation1] sm:$0xff] %v37
    %s39 = scalar_lea.vmem [#allocation0], 8
    %s40 = scalar_lea.vmem %s39, 7 [#allocation0]
    %v41 = vld [vmem:[%s40] ss:$-1 sm:$0xff]
    %v42 = vrot.slane %v41, 1
    %v43 = vlaneseq
    %v44 = vshrl.u32 %v43, 7
    %vm45 = vcmp.lt.s32.totalorder %v44, 7
    %46 = vst.msk [vmem:[#allocation1] sm:$0xff] %vm45, %v42
    // Predicated region
    $region36: #{reverse.1} parent=1 // pred_check
      _
    $region37: #{reverse.1} parent=1 // pred_check_branch
      %48 = sbr.rel (0) target = $region39
    $region38: #{reverse.1} parent=1 // pred_region
      // Predicated region
      $region40: #{reverse.1} parent=38 // pred_check
        _
      $region41: #{reverse.1} parent=38 // pred_check_branch
        %50 = sbr.rel (0) target = $region43
      $region42: #{reverse.1} parent=38 // pred_region
        // Predicated region
        $region55: #{reverse.1} parent=42 // pred_check
          _
        $region56: #{reverse.1} parent=42 // pred_check_branch
          %65 = sbr.rel (0) target = $region58
        $region57: #{reverse.1} parent=42 // pred_region
          loop: start=0, step=1, limit=1
          $region59: #{reverse.1} parent=57 // loop_pre_header
            _
          $region60: #{reverse.1} parent=57 // loop_header
            %s67 = sphi 0, %s71
            %p68 = scmp.ge.s32.totalorder %s67, 1
            %s72 = sphi [#allocation1], [#allocation1]
            %s73 = sphi %s1, %s1
          $region61: #{reverse.1} parent=57 // loop_header_branch
            %70 = sbr.rel (%p68) target = $region65
          $region62: #{reverse.1} parent=57 // loop_body
            %v74 = vld [vmem:[%s72] sm:$0xff]
            %75 = vst [vmem:[%s73] sm:$0xff] %v74
          $region63: #{reverse.1} parent=57 // loop_footer
            %s71 = sadd.s32 1, %s67
          $region64: #{reverse.1} parent=57 // loop_footer_branch
            %66 = sbr.rel target = $region60
          $region65: #{reverse.1} parent=57 // loop_exit
            _
        $region58: #{reverse.1} parent=42 // pred_fallthru
          _
        // Predicated region
        $region66: #{reverse.1} parent=42 // pred_check
          _
        $region67: #{reverse.1} parent=42 // pred_check_branch
          %77 = sbr.rel target = $region69
        $region68: #{reverse.1} parent=42 // pred_region
          _
        $region69: #{reverse.1} parent=42 // pred_fallthru
          _
      $region43: #{reverse.1} parent=38 // pred_fallthru
        _
      // Predicated region
      $region44: #{reverse.1} parent=38 // pred_check
        _
      $region45: #{reverse.1} parent=38 // pred_check_branch
        %52 = sbr.rel target = $region47
      $region46: #{reverse.1} parent=38 // pred_region
        loop: start=0, step=1, limit=1
        $region48: #{reverse.1} parent=46 // loop_pre_header
          _
        $region49: #{reverse.1} parent=46 // loop_header
          %s55 = sphi 0, %s59
          %p56 = scmp.ge.s32.totalorder %s55, 1
          %s60 = sphi [#allocation1], [#allocation1]
          %s61 = sphi %s1, %s1
        $region50: #{reverse.1} parent=46 // loop_header_branch
          %58 = sbr.rel (%p56) target = $region54
        $region51: #{reverse.1} parent=46 // loop_body
          %v62 = vld [vmem:[%s60] sm:$0xff]
          %63 = vst [vmem:[%s61] sm:$0xff] %v62
        $region52: #{reverse.1} parent=46 // loop_footer
          %s59 = sadd.s32 1, %s55
        $region53: #{reverse.1} parent=46 // loop_footer_branch
          %54 = sbr.rel target = $region49
        $region54: #{reverse.1} parent=46 // loop_exit
          _
      $region47: #{reverse.1} parent=38 // pred_fallthru
        _
    $region39: #{reverse.1} parent=1 // pred_fallthru
      _
    %78 = vnop

// kernel: fourier_unit.1
$region0: #{fourier_unit.1}
  #allocation0 [shape = 'u32[]', space=smem, size = 0x4, offset = 0x4, fixed_abs, tag = 'smem constant byte address 0x4 - core index']
  #allocation1 [shape = 'u32[144,128]{1,0:T(1,128)}', space=vmem, size = 0x12000, scoped, tag = 'internal scratch']
  %s0 = inlined_call_operand.vmem [shape: f32[8,8], index: 0, kind: input, shape index: {}]
  %s1 = inlined_call_operand.vmem [shape: f32[8,256], index: 1, kind: input, shape index: {}]
  %s2 = inlined_call_operand.vmem [shape: f32[1,256], index: 2, kind: input, shape index: {}]
  %s3 = inlined_call_operand.vmem [shape: f32[8,256], index: 3, kind: output, shape index: {}]
  %s4 = sld [smem:[#allocation0]]
  $region22: #{fourier_unit.1} parent=0
    _
  %s6 = ssub.s32 1, %s4
  %s7 = scalar_select 0, %s6, %s4
  // Predicated region
  $region2: #{fourier_unit.1} parent=0 // pred_check
    _
  $region3: #{fourier_unit.1} parent=0 // pred_check_branch
    %9 = sbr.rel (0) target = $region5
  $region4: #{fourier_unit.1} parent=0 // pred_region
    _
  $region5: #{fourier_unit.1} parent=0 // pred_fallthru
    _
  // Predicated region
  $region6: #{fourier_unit.1} parent=0 // pred_check
    _
  $region7: #{fourier_unit.1} parent=0 // pred_check_branch
    %11 = sbr.rel (0) target = $region9
  $region8: #{fourier_unit.1} parent=0 // pred_region
    _
  $region9: #{fourier_unit.1} parent=0 // pred_fallthru
    _
  // Predicated region
  $region10: #{fourier_unit.1} parent=0 // pred_check
    _
  $region11: #{fourier_unit.1} parent=0 // pred_check_branch
    %13 = sbr.rel (0) target = $region13
  $region12: #{fourier_unit.1} parent=0 // pred_region
    _
  $region13: #{fourier_unit.1} parent=0 // pred_fallthru
    _
  %v14 = vld [vmem:[%s0] sm:$0xff]
  %v15 = vld [vmem:[%s1] sm:$0xff]
  %v16 = vld [vmem:[%s1 + $0x8] sm:$0xff]
  %v17 = vld [vmem:[%s2] sm:$0x3]
  %v19 = vlaneseq
  %v20 = vshrl.u32 %v19, 7
  %v21 = vsub.s32 0, %v20
  %v22 = vrot.slane %v17, %v21
  %v23 = vlaneseq
  %v24 = vshrl.u32 %v23, 7
  %v25 = vsub.s32 1, %v24
  %v26 = vrot.slane %v17, %v25
  %vm29 = vcmask 64512
  %v31 = vsel %vm29, %v14, 0
  %33 = vmatprep.subr.mxu0 %v16
  %34 = vmatpush1.msra.mxu0 %v15
  %35 = vmatprep.subr.mxu0 0.0
  %36 = vmatpush1.msra.mxu0 0.0
  %37 = vmatprep.subr.mxu0 0.0
  %38 = vmatpush1.msra.mxu0 0.0
  %39 = vmatprep.subr.mxu0 0.0
  %40 = vmatpush1.msra.mxu0 0.0
  %41 = vmatprep.subr.mxu0 0.0
  %42 = vmatpush1.msra.mxu0 0.0
  %43 = vmatprep.subr.mxu0 0.0
  %44 = vmatpush1.msra.mxu0 0.0
  %45 = vmatprep.subr.mxu0 0.0
  %46 = vmatpush1.msra.mxu0 0.0
  %47 = vmatprep.subr.mxu0 0.0
  %48 = vmatpush1.msra.mxu0 0.0
  %49 = vmatprep.subr.mxu0 0.0
  %50 = vmatpush1.msra.mxu0 0.0
  %51 = vmatprep.subr.mxu0 0.0
  %52 = vmatpush1.msra.mxu0 0.0
  %53 = vmatprep.subr.mxu0 0.0
  %54 = vmatpush1.msra.mxu0 0.0
  %55 = vmatprep.subr.mxu0 0.0
  %56 = vmatpush1.msra.mxu0 0.0
  %57 = vmatprep.subr.mxu0 0.0
  %58 = vmatpush1.msra.mxu0 0.0
  %59 = vmatprep.subr.mxu0 0.0
  %60 = vmatpush1.msra.mxu0 0.0
  %61 = vmatprep.subr.mxu0 0.0
  %62 = vmatpush1.msra.mxu0 0.0
  %63 = vmatprep.subr.mxu0 0.0
  %64 = vmatpush1.msra.mxu0 0.0
  %65 = vmatprep.subr.mxu0 0.0
  %66 = vmatpush1.msra.mxu0 0.0
  %67 = vmatprep.subr.mxu0 0.0
  %68 = vmatpush1.msra.mxu0 0.0
  %69 = vmatprep.subr.mxu0 0.0
  %70 = vmatpush1.msra.mxu0 0.0
  %71 = vmatprep.subr.mxu0 0.0
  %72 = vmatpush1.msra.mxu0 0.0
  %73 = vmatprep.subr.mxu0 0.0
  %74 = vmatpush1.msra.mxu0 0.0
  %75 = vmatprep.subr.mxu0 0.0
  %76 = vmatpush1.msra.mxu0 0.0
  %77 = vmatprep.subr.mxu0 0.0
  %78 = vmatpush1.msra.mxu0 0.0
  %79 = vmatprep.subr.mxu0 0.0
  %80 = vmatpush1.msra.mxu0 0.0
  %81 = vmatprep.subr.mxu0 0.0
  %82 = vmatpush1.msra.mxu0 0.0
  %83 = vmatprep.subr.mxu0 0.0
  %84 = vmatpush1.msra.mxu0 0.0
  %85 = vmatprep.subr.mxu0 0.0
  %86 = vmatpush1.msra.mxu0 0.0
  %87 = vmatprep.subr.mxu0 0.0
  %88 = vmatpush1.msra.mxu0 0.0
  %89 = vmatprep.subr.mxu0 0.0
  %90 = vmatpush1.msra.mxu0 0.0
  %91 = vmatprep.subr.mxu0 0.0
  %92 = vmatpush1.msra.mxu0 0.0
  %93 = vmatprep.subr.mxu0 0.0
  %94 = vmatpush1.msra.mxu0 0.0
  %95 = vmatprep.subr.mxu0 0.0
  %96 = vmatpush1.msra.mxu0 0.0
  %97 = vmatprep.mubr.f32.mxu0 0.0
  %98 = vmatmul.mubr.f32.gmra.mrb[0].mxu0 %v31
  %v99 = vpop.f32.mrb[0].mxu0
  %v100 = vadd.f32 %v22, %v99
  %v101 = vpop.f32.mrb[0].mxu0
  %v102 = vadd.f32 %v26, %v101
  %103 = vdwg.mxu0
  %v104 = vand.u32 2147483647, %v100
  %v105 = vand.u32 2147483647, %v102
  %106 = vst [vmem:[%s3] sm:$0xff] %v104
  %107 = vst [vmem:[%s3 + $0x8] sm:$0xff] %v105
  // Predicated region
  $region14: #{fourier_unit.1} parent=0 // pred_check
    _
  $region15: #{fourier_unit.1} parent=0 // pred_check_branch
    %109 = sbr.rel (0) target = $region17
  $region16: #{fourier_unit.1} parent=0 // pred_region
    _
  $region17: #{fourier_unit.1} parent=0 // pred_fallthru
    _
  // Predicated region
  $region18: #{fourier_unit.1} parent=0 // pred_check
    _
  $region19: #{fourier_unit.1} parent=0 // pred_check_branch
    %111 = sbr.rel (0) target = $region21
  $region20: #{fourier_unit.1} parent=0 // pred_region
    _
  $region21: #{fourier_unit.1} parent=0 // pred_fallthru
    _

</llo_original>
